<compile_context>
chip_gen: v6e
topology: v6e:2x2x1
jax: 0.10.0
libtpu: 0.0.40
codegen_flags: <defaults>
</compile_context>

<pallas_src>
import jax
import jax.numpy as jnp
from jax.experimental import pallas as pl
from jax.experimental.pallas import tpu as pltpu


def _round_up(x, m):
    return ((x + m - 1) // m) * m


def _cdiv(a, b):
    return (a + b - 1) // b


def _tpu_generation():
    """Best-effort chip generation string (e.g. 'tpu v5e'); '' if unknown."""
    try:
        info = pltpu.get_tpu_info()
        gen = str(getattr(info, "chip_version", "")).lower()
        if gen:
            return gen
    except Exception:
        pass
    try:
        return jax.devices()[0].device_kind.lower()
    except Exception:
        return ""


def _make_kernel(num_layers, split, hidden_dims, action_dim, out_pad,
                 act_dtype, fuse_min):
    """Kernel covering BOTH Q networks for one batch tile.

    Packed mode : refs = (s, W0,b0, W1,b1, ..., out)   (block-diag hidden layers)
    Split mode  : refs = (s, W0,b0, W1q1,b1q1,W1q2,b1q2, ..., out)
    Biases stay f32 and are added to the f32 MXU accumulator; nn.Identity on
    the output layer, nn.ReLU between hidden layers.
    """

    def kernel(*refs):
        s_ref = refs[0]
        p_refs = refs[1:-1]
        out_ref = refs[-1]
        tb = out_ref.shape[0]

        def dense(h, w_ref, b_ref, relu):
            w = w_ref[...]
            h = jnp.dot(h.astype(w.dtype), w,
                        preferred_element_type=jnp.float32) + b_ref[...]
            if relu:
                # bf16 activations on v6e/v7x (vreg footprint), f32 on v5e.
                h = jnp.maximum(h, 0.0).astype(act_dtype)
            return h

        if not split:
            # Fully packed: one matmul per layer for both Q nets.
            h = s_ref[...]
            for li in range(num_layers):
                h = dense(h, p_refs[2 * li], p_refs[2 * li + 1],
                          relu=(li < num_layers - 1))
            q1 = h[:, :action_dim]
            q2 = h[:, action_dim:2 * action_dim]
            cols = [h]                       # already [q1 | q2]
        else:
            # Layer 0 stays concatenated (always free); hidden/output layers
            # run as two separate per-Q matmuls (no structural-zero MACs).
            h = dense(s_ref[...], p_refs[0], p_refs[1], relu=True)
            h0 = hidden_dims[0]
            h1, h2 = h[:, :h0], h[:, h0:]
            idx = 2
            for li in range(1, num_layers):
                relu = li < num_layers - 1
                h1 = dense(h1, p_refs[idx], p_refs[idx + 1], relu)
                h2 = dense(h2, p_refs[idx + 2], p_refs[idx + 3], relu)
                idx += 4
            q1, q2 = h1, h2
            cols = [h1, h2]

        used = 2 * action_dim
        if fuse_min:
            # Fused SAC epilogue: min over the two Q heads, one free VPU op,
            # written into the same lane-padded slab (no extra HBM round trip).
            cols.append(jnp.minimum(q1, q2))
            used += action_dim
        if out_pad > used:
            cols.append(jnp.zeros((tb, out_pad - used), jnp.float32))
        # Single lane-dense store.
        out_ref[...] = jnp.concatenate(cols, axis=1).astype(out_ref.dtype)

    return kernel


def _pack_params(q1_params, q2_params, split, compute_dtype):
    """Flattens/pack both Q nets' parameters for the kernel."""
    num_layers = len(q1_params)
    flat = []
    for li in range(num_layers):
        w1, b1 = q1_params[li]
        w2, b2 = q2_params[li]
        if li == 0:
            w = jnp.concatenate([w1, w2], axis=1).astype(compute_dtype)
            b = jnp.concatenate([b1, b2], axis=1).astype(jnp.float32)
            flat += [w, b]
        elif not split:
            z12 = jnp.zeros((w1.shape[0], w2.shape[1]), w1.dtype)
            z21 = jnp.zeros((w2.shape[0], w1.shape[1]), w2.dtype)
            w = jnp.concatenate(
                [jnp.concatenate([w1, z12], axis=1),
                 jnp.concatenate([z21, w2], axis=1)], axis=0).astype(compute_dtype)
            b = jnp.concatenate([b1, b2], axis=1).astype(jnp.float32)
            flat += [w, b]
        else:
            flat += [w1.astype(compute_dtype), b1.astype(jnp.float32),
                     w2.astype(compute_dtype), b2.astype(jnp.float32)]
    return flat


def double_q_forward(s, q1_params, q2_params, *, tile_b=None, target_steps=4,
                     compute_dtype=jnp.bfloat16, out_dtype=jnp.float32,
                     fuse_min=False, mxu_tile=None):
    """Fused forward for both Q nets.

    Returns (q1, q2) each [B, action_dim]; with fuse_min=True additionally
    returns min(q1, q2) computed inside the kernel.
    """
    num_layers = len(q1_params)
    assert len(q2_params) == num_layers
    B, state_dim = s.shape
    action_dim = q1_params[-1][0].shape[1]
    hidden_dims = [w.shape[1] for (w, _) in q1_params[:-1]]

    gen = _tpu_generation()
    is_v5 = "v5" in gen
    if mxu_tile is None:
        mxu_tile = 128 if is_v5 else 256   # MXU tile lanes per generation
    # Block-diagonal packing only while 2*h fits one MXU tile; above that,
    # split into two per-Q matmuls per layer.
    split = (num_layers > 1) and any(2 * h > mxu_tile for h in hidden_dims)

    # v5e has no bf16 VPU datapath -> keep elementwise (bias/ReLU) in f32 there.
    act_dtype = (jnp.float32
                 if (compute_dtype == jnp.float32 or is_v5) else compute_dtype)

    needed_cols = (3 if fuse_min else 2) * action_dim
    out_pad = _round_up(needed_cols, 128)   # lane-dense -> unmasked vst

    flat_params = _pack_params(q1_params, q2_params, split, compute_dtype)

    # Batch tiling: ~target_steps fat tiles, at least 2 grid steps when
    # possible (megacore sharding on v7x), each tile a multiple of 8 sublanes.
    b8 = _round_up(B, 8)
    tb = _round_up(max(_cdiv(b8, max(int(target_steps), 1)), 8), 8)
    if tile_b is not None:
        tb = min(tb, _round_up(int(tile_b), 8))
    if b8 > 8:
        tb = min(tb, _round_up(_cdiv(b8, 2), 8))   # guarantee >= 2 steps
    tb = max(tb, 8)
    b_pad = _round_up(b8, tb)
    if b_pad != B:
        s = jnp.pad(s, ((0, b_pad - B), (0, 0)))
    grid = (b_pad // tb,)

    def resident_spec(arr):
        # Full-array block with constant index_map: DMA'd once, stays resident
        # in VMEM across all batch tiles.
        nd = arr.ndim
        return pl.BlockSpec(arr.shape, lambda i, _nd=nd: (0,) * _nd)

    in_specs = [pl.BlockSpec((tb, state_dim), lambda i: (i, 0))]
    in_specs += [resident_spec(a) for a in flat_params]
    out_specs = pl.BlockSpec((tb, out_pad), lambda i: (i, 0))
    out_shape = jax.ShapeDtypeStruct((b_pad, out_pad), out_dtype)

    # Derived VMEM budget: double-buffered streamed tiles + (still double
    # buffered) resident params + activation live set, 1.5x headroom,
    # capped safely below v7x's 64 MiB physical VMEM per TensorCore.
    param_bytes = sum(a.size * a.dtype.itemsize for a in flat_params)
    max_width = max([out_pad] + [2 * h for h in hidden_dims] + [2 * action_dim])
    act_bytes = 4 * tb * max_width * 4
    vmem_limit = int(1.5 * (2 * tb * state_dim * s.dtype.itemsize
                            + 2 * tb * out_pad * jnp.dtype(out_dtype).itemsize
                            + 2 * param_bytes + act_bytes)) + (4 << 20)
    vmem_limit = max(8 << 20, min(vmem_limit, 56 << 20))

    out = pl.pallas_call(
        _make_kernel(num_layers, split, hidden_dims, action_dim, out_pad,
                     act_dtype, fuse_min),
        grid=grid,
        in_specs=in_specs,
        out_specs=out_specs,
        out_shape=out_shape,
        compiler_params=pltpu.CompilerParams(
            dimension_semantics=("parallel",),   # independent batch tiles
            vmem_limit_bytes=vmem_limit,
        ),
    )(s, *flat_params)

    out = out[:B]
    q1 = out[:, :action_dim]
    q2 = out[:, action_dim:2 * action_dim]
    if fuse_min:
        return q1, q2, out[:, 2 * action_dim:3 * action_dim]
    return q1, q2


def init_double_q_params(key, state_dim, action_dim, hid_shape):
    """Deterministic init mimicking PyTorch Linear default (U[-1/sqrt(fan_in), ...])."""
    layers = [state_dim] + list(hid_shape) + [action_dim]

    def init_net(key):
        params = []
        for i in range(len(layers) - 1):
            fan_in, fan_out = layers[i], layers[i + 1]
            key, kw, kb = jax.random.split(key, 3)
            bound = 1.0 / jnp.sqrt(jnp.float32(fan_in))
            # Stored as [in, out] (transposed from PyTorch's [out, in]).
            w = jax.random.uniform(kw, (fan_in, fan_out), jnp.float32, -bound, bound)
            b = jax.random.uniform(kb, (1, fan_out), jnp.float32, -bound, bound)
            params.append((w, b))
        return params, key

    q1_params, key = init_net(key)
    q2_params, key = init_net(key)
    return q1_params, q2_params


def _reference_forward(s, params):
    h = s
    n = len(params)
    for i, (w, b) in enumerate(params):
        h = h @ w + b
        if i < n - 1:
            h = jnp.maximum(h, 0.0)
    return h


if __name__ == "__main__":
    # Small shapes consistent with the module: s is [batch, state_dim].
    batch, state_dim, action_dim = 64, 16, 8
    hid_shape = (32, 32)

    key = jax.random.PRNGKey(0)
    key, ks = jax.random.split(key)
    s = jax.random.normal(ks, (batch, state_dim), jnp.float32)

    q1_params, q2_params = init_double_q_params(key, state_dim, action_dim, hid_shape)

    q1_ref = _reference_forward(s, q1_params)
    q2_ref = _reference_forward(s, q2_params)

    # f32-operand validation path (packed block-diagonal hidden layers).
    q1, q2 = double_q_forward(s, q1_params, q2_params, compute_dtype=jnp.float32)
    jax.block_until_ready((q1, q2))
    assert q1.shape == (batch, action_dim) and q2.shape == (batch, action_dim)
    assert jnp.allclose(q1, q1_ref, atol=1e-5, rtol=1e-5)
    assert jnp.allclose(q2, q2_ref, atol=1e-5, rtol=1e-5)

    # Default fast path: bf16 operands, f32 MXU accumulation.
    q1b, q2b = double_q_forward(s, q1_params, q2_params)
    jax.block_until_ready((q1b, q2b))
    assert jnp.allclose(q1b, q1_ref, atol=5e-2, rtol=5e-2)
    assert jnp.allclose(q2b, q2_ref, atol=5e-2, rtol=5e-2)

    # Split-hidden-layer path (forced small MXU tile): two per-Q matmuls/layer.
    q1s, q2s = double_q_forward(s, q1_params, q2_params,
                                compute_dtype=jnp.float32, mxu_tile=32)
    jax.block_until_ready((q1s, q2s))
    assert jnp.allclose(q1s, q1_ref, atol=1e-5, rtol=1e-5)
    assert jnp.allclose(q2s, q2_ref, atol=1e-5, rtol=1e-5)

    # Fused SAC epilogue: min(q1, q2) emitted from the same kernel.
    q1m, q2m, qmin = double_q_forward(s, q1_params, q2_params,
                                      compute_dtype=jnp.float32, fuse_min=True)
    jax.block_until_ready((q1m, q2m, qmin))
    assert jnp.allclose(q1m, q1_ref, atol=1e-5, rtol=1e-5)
    assert jnp.allclose(q2m, q2_ref, atol=1e-5, rtol=1e-5)
    assert jnp.allclose(qmin, jnp.minimum(q1_ref, q2_ref), atol=1e-5, rtol=1e-5)

    # Ragged batch (exercises batch padding/slicing and the >=2-step grid).
    s_small = s[:10]
    q1r, q2r = double_q_forward(s_small, q1_params, q2_params,
                                compute_dtype=jnp.float32)
    jax.block_until_ready((q1r, q2r))
    assert jnp.allclose(q1r, q1_ref[:10], atol=1e-5, rtol=1e-5)
    assert jnp.allclose(q2r, q2_ref[:10], atol=1e-5, rtol=1e-5)

    print("KERNEL_OK")
</pallas_src>

<mosaic_0001>
module attributes {stable_mosaic.version = 11 : i64} {
  func.func @kernel(%arg0: i32, %arg1: memref<16x16xf32, #tpu.memory_space<vmem>>, %arg2: memref<16x64xf32, #tpu.memory_space<vmem>>, %arg3: memref<1x64xf32, #tpu.memory_space<vmem>>, %arg4: memref<64x64xf32, #tpu.memory_space<vmem>>, %arg5: memref<1x64xf32, #tpu.memory_space<vmem>>, %arg6: memref<64x16xf32, #tpu.memory_space<vmem>>, %arg7: memref<1x16xf32, #tpu.memory_space<vmem>>, %arg8: memref<16x128xf32, #tpu.memory_space<vmem>>) attributes {dimension_semantics = [#tpu.dimension_semantics<parallel>], iteration_bounds = array<i64: 4>, scalar_prefetch = 0 : i64, scratch_operands = 0 : i64, tpu.core_type = #tpu.core_type<tc>, window_params = [{transform_indices = @transform_0, window_bounds = array<i64: 16, 16>}, {pipeline_mode = #tpu.pipeline_mode<synchronous>, transform_indices = @transform_1, window_bounds = array<i64: 16, 64>}, {pipeline_mode = #tpu.pipeline_mode<synchronous>, transform_indices = @transform_2, window_bounds = array<i64: 1, 64>}, {pipeline_mode = #tpu.pipeline_mode<synchronous>, transform_indices = @transform_3, window_bounds = array<i64: 64, 64>}, {pipeline_mode = #tpu.pipeline_mode<synchronous>, transform_indices = @transform_4, window_bounds = array<i64: 1, 64>}, {pipeline_mode = #tpu.pipeline_mode<synchronous>, transform_indices = @transform_5, window_bounds = array<i64: 64, 16>}, {pipeline_mode = #tpu.pipeline_mode<synchronous>, transform_indices = @transform_6, window_bounds = array<i64: 1, 16>}, {transform_indices = @transform_7, window_bounds = array<i64: 16, 128>}]} {
    %c0 = arith.constant 0 : index
    %c0_0 = arith.constant 0 : index
    %0 = vector.load %arg1[%c0, %c0_0] : memref<16x16xf32, #tpu.memory_space<vmem>>, vector<16x16xf32>
    %c0_1 = arith.constant 0 : index
    %c0_2 = arith.constant 0 : index
    %1 = vector.load %arg2[%c0_1, %c0_2] : memref<16x64xf32, #tpu.memory_space<vmem>>, vector<16x64xf32>
    %cst = arith.constant dense<0.000000e+00> : vector<16x64xf32>
    %2 = tpu.matmul %0, %1, %cst {dimension_numbers = #tpu.dot_dimension_numbers<[1], [0], [0], [1], [0, 0, 1, 1], [], []>} : vector<16x16xf32>, vector<16x64xf32>, vector<16x64xf32> -> vector<16x64xf32>
    %c0_3 = arith.constant 0 : index
    %c0_4 = arith.constant 0 : index
    %3 = vector.load %arg3[%c0_3, %c0_4] : memref<1x64xf32, #tpu.memory_space<vmem>>, vector<1x64xf32>
    %4 = vector.broadcast %3 : vector<1x64xf32> to vector<16x64xf32>
    %5 = arith.addf %2, %4 : vector<16x64xf32>
    %cst_5 = arith.constant 0.000000e+00 : f32
    %6 = vector.broadcast %cst_5 : f32 to vector<16x64xf32>
    %7 = arith.maximumf %5, %6 : vector<16x64xf32>
    %c0_6 = arith.constant 0 : index
    %c0_7 = arith.constant 0 : index
    %8 = vector.load %arg4[%c0_6, %c0_7] : memref<64x64xf32, #tpu.memory_space<vmem>>, vector<64x64xf32>
    %cst_8 = arith.constant dense<0.000000e+00> : vector<16x64xf32>
    %9 = tpu.matmul %7, %8, %cst_8 {dimension_numbers = #tpu.dot_dimension_numbers<[1], [0], [0], [1], [0, 0, 1, 1], [], []>} : vector<16x64xf32>, vector<64x64xf32>, vector<16x64xf32> -> vector<16x64xf32>
    %c0_9 = arith.constant 0 : index
    %c0_10 = arith.constant 0 : index
    %10 = vector.load %arg5[%c0_9, %c0_10] : memref<1x64xf32, #tpu.memory_space<vmem>>, vector<1x64xf32>
    %11 = vector.broadcast %10 : vector<1x64xf32> to vector<16x64xf32>
    %12 = arith.addf %9, %11 : vector<16x64xf32>
    %cst_11 = arith.constant 0.000000e+00 : f32
    %13 = vector.broadcast %cst_11 : f32 to vector<16x64xf32>
    %14 = arith.maximumf %12, %13 : vector<16x64xf32>
    %c0_12 = arith.constant 0 : index
    %c0_13 = arith.constant 0 : index
    %15 = vector.load %arg6[%c0_12, %c0_13] : memref<64x16xf32, #tpu.memory_space<vmem>>, vector<64x16xf32>
    %cst_14 = arith.constant dense<0.000000e+00> : vector<16x16xf32>
    %16 = tpu.matmul %14, %15, %cst_14 {dimension_numbers = #tpu.dot_dimension_numbers<[1], [0], [0], [1], [0, 0, 1, 1], [], []>} : vector<16x64xf32>, vector<64x16xf32>, vector<16x16xf32> -> vector<16x16xf32>
    %c0_15 = arith.constant 0 : index
    %c0_16 = arith.constant 0 : index
    %17 = vector.load %arg7[%c0_15, %c0_16] : memref<1x16xf32, #tpu.memory_space<vmem>>, vector<1x16xf32>
    %18 = vector.broadcast %17 : vector<1x16xf32> to vector<16x16xf32>
    %19 = arith.addf %16, %18 : vector<16x16xf32>
    %cst_17 = arith.constant 0.000000e+00 : f32
    %20 = vector.broadcast %cst_17 : f32 to vector<16x112xf32>
    %21 = tpu.concatenate %19, %20 in 1 : vector<16x16xf32>, vector<16x112xf32> -> vector<16x128xf32>
    %c0_18 = arith.constant 0 : index
    %c0_19 = arith.constant 0 : index
    %22 = vector.load %arg8[%c0_18, %c0_19] : memref<16x128xf32, #tpu.memory_space<vmem>>, vector<16x128xf32>
    tpu.vector_store %arg8[%c0_18, %c0_19], %21 {strides = array<i32>} : memref<16x128xf32, #tpu.memory_space<vmem>>, vector<16x128xf32>,
    return
  }
  func.func @transform_0(%arg0: i32) -> (i32, i32) {
    %c0_i32 = arith.constant 0 : i32
    %c0_i32_0 = arith.constant 0 : i32
    return %arg0, %c0_i32 : i32, i32
  }
  func.func @transform_1(%arg0: i32) -> (i32, i32) {
    %c0_i32 = arith.constant 0 : i32
    %c0_i32_0 = arith.constant 0 : i32
    %c0_i32_1 = arith.constant 0 : i32
    return %c0_i32, %c0_i32_0 : i32, i32
  }
  func.func @transform_2(%arg0: i32) -> (i32, i32) {
    %c0_i32 = arith.constant 0 : i32
    %c0_i32_0 = arith.constant 0 : i32
    %c0_i32_1 = arith.constant 0 : i32
    return %c0_i32, %c0_i32_0 : i32, i32
  }
  func.func @transform_3(%arg0: i32) -> (i32, i32) {
    %c0_i32 = arith.constant 0 : i32
    %c0_i32_0 = arith.constant 0 : i32
    %c0_i32_1 = arith.constant 0 : i32
    return %c0_i32, %c0_i32_0 : i32, i32
  }
  func.func @transform_4(%arg0: i32) -> (i32, i32) {
    %c0_i32 = arith.constant 0 : i32
    %c0_i32_0 = arith.constant 0 : i32
    %c0_i32_1 = arith.constant 0 : i32
    return %c0_i32, %c0_i32_0 : i32, i32
  }
  func.func @transform_5(%arg0: i32) -> (i32, i32) {
    %c0_i32 = arith.constant 0 : i32
    %c0_i32_0 = arith.constant 0 : i32
    %c0_i32_1 = arith.constant 0 : i32
    return %c0_i32, %c0_i32_0 : i32, i32
  }
  func.func @transform_6(%arg0: i32) -> (i32, i32) {
    %c0_i32 = arith.constant 0 : i32
    %c0_i32_0 = arith.constant 0 : i32
    %c0_i32_1 = arith.constant 0 : i32
    return %c0_i32, %c0_i32_0 : i32, i32
  }
  func.func @transform_7(%arg0: i32) -> (i32, i32) {
    %c0_i32 = arith.constant 0 : i32
    %c0_i32_0 = arith.constant 0 : i32
    return %arg0, %c0_i32 : i32, i32
  }
}

</mosaic_0001>

<llo_original>
// kernel: tpu_custom_call.1
$region0: #{tpu_custom_call.1}
  #allocation0 [shape = 'u32[]', space=smem, size = 0x4, offset = 0x4, fixed_abs, tag = 'smem constant byte address 0x4 - core index']
  #allocation1 [shape = 'u32[144,128]{1,0:T(1,128)}', space=vmem, size = 0x12000, scoped, tag = 'internal scratch']
  %s0 = inlined_call_operand.vmem [shape: f32[64,16], index: 0, kind: input, shape index: {}]
  %s1 = inlined_call_operand.vmem [shape: f32[16,64], index: 1, kind: input, shape index: {}]
  %s2 = inlined_call_operand.vmem [shape: f32[1,64], index: 2, kind: input, shape index: {}]
  %s3 = inlined_call_operand.vmem [shape: f32[64,64], index: 3, kind: input, shape index: {}]
  %s4 = inlined_call_operand.vmem [shape: f32[1,64], index: 4, kind: input, shape index: {}]
  %s5 = inlined_call_operand.vmem [shape: f32[64,16], index: 5, kind: input, shape index: {}]
  %s6 = inlined_call_operand.vmem [shape: f32[1,16], index: 6, kind: input, shape index: {}]
  %s7 = inlined_call_operand.hbm [shape: f32[64,128], index: 7, kind: output, shape index: {}]
  %s8 = sld [smem:[#allocation0]]
  $region61: #{tpu_custom_call.1} parent=0
    _
  %s10 = ssub.s32 1, %s8
  %s11 = scalar_select 0, %s10, %s8
  $region1: #{tpu_custom_call.1} parent=0
    #allocation2 [shape = 'u8[16384]{0}', space=vmem, size = 0x4000, scoped, tag = 'output window, operand 0']
    #allocation3 [shape = 's32[2]{0}', space=sflag, size = 0x8, scoped, tag = 'scoped memory for tpu_custom_call.1']
    %12 = vsyncpa [#allocation3], 0
    %s13 = scalar_lea.sflag [#allocation3], 1
    %14 = vsyncpa %s13, 0
    loop: start=0, step=1, limit=6
    $region2: #{tpu_custom_call.1} parent=1 // loop_pre_header
      _
    $region3: #{tpu_custom_call.1} parent=1 // loop_header
      %s16 = sphi 0, %s20
      %p17 = scmp.ge.s32.totalorder %s16, 6
      %s26 = sphi 0, %s28
      %s29 = sphi 0, %s26
      %s30 = sphi 0, %s29
      %s46 = sphi 0, %s30
      %s50 = sphi 0, %s50
      %s52 = sphi 0, %s50
      %s53 = sphi 0, %s52
      %s67 = sphi 0, %s53
      %s71 = sphi 0, %s71
      %s73 = sphi 0, %s71
      %s74 = sphi 0, %s73
      %s88 = sphi 0, %s74
      %s92 = sphi 0, %s92
      %s94 = sphi 0, %s92
      %s95 = sphi 0, %s94
      %s109 = sphi 0, %s95
      %s113 = sphi 0, %s113
      %s115 = sphi 0, %s113
      %s116 = sphi 0, %s115
      %s130 = sphi 0, %s116
      %s134 = sphi 0, %s134
      %s136 = sphi 0, %s134
      %s137 = sphi 0, %s136
      %s151 = sphi 0, %s137
      %s155 = sphi 0, %s155
      %s157 = sphi 0, %s155
      %s158 = sphi 0, %s157
      %s172 = sphi 0, %s158
      %s178 = sphi 0, %s180
      %s181 = sphi 0, %s178
      %s182 = sphi 0, %s181
      %s198 = sphi 0, %s182
    $region4: #{tpu_custom_call.1} parent=1 // loop_header_branch
      %19 = sbr.rel (%p17) target = $region8
    $region5: #{tpu_custom_call.1} parent=1 // loop_body
      %s21 = ssub.s32 %s16, 1
      %s22 = ssub.s32 %s16, 2
      %s23 = sadd.s32 %s16, 1
      %s24 = ssub.s32 %s16, %s23
      %p25 = scmp.eq.s32.totalorder %s24, 0
      %s27 = sadd.s32 %s26, 1
      %s28 = scalar_select %p25, %s26, %s27
      %p31 = pneg %p25
      %p32 = scmp.eq.s32.totalorder %s16, 3
      %p33 = por %p31, %p32
      %p34 = scmp.ne.s32.totalorder %s26, %s29
      %p35 = scmp.eq.s32.totalorder %s16, 0
      %p36 = por %p34, %p35
      %p37 = scmp.ne.s32.totalorder %s26, %s29
      %p38 = scmp.eq.s32.totalorder %s21, 3
      %p39 = por %p37, %p38
      %p40 = scmp.ne.s32.totalorder %s29, %s30
      %p41 = scmp.eq.s32.totalorder %s21, 0
      %p42 = por %p40, %p41
      %p43 = scmp.ne.s32.totalorder %s29, %s30
      %p44 = scmp.eq.s32.totalorder %s22, 3
      %p45 = por %p43, %p44
      %p47 = scmp.ne.s32.totalorder %s30, %s46
      %p48 = scmp.eq.s32.totalorder %s22, 0
      %p49 = por %p47, %p48
      %s51 = sadd.s32 %s50, 1
      %p54 = scmp.eq.s32.totalorder %s16, 3
      %p55 = scmp.ne.s32.totalorder %s50, %s52
      %p56 = scmp.eq.s32.totalorder %s16, 0
      %p57 = por %p55, %p56
      %p58 = scmp.ne.s32.totalorder %s50, %s52
      %p59 = scmp.eq.s32.totalorder %s21, 3
      %p60 = por %p58, %p59
      %p61 = scmp.ne.s32.totalorder %s52, %s53
      %p62 = scmp.eq.s32.totalorder %s21, 0
      %p63 = por %p61, %p62
      %p64 = scmp.ne.s32.totalorder %s52, %s53
      %p65 = scmp.eq.s32.totalorder %s22, 3
      %p66 = por %p64, %p65
      %p68 = scmp.ne.s32.totalorder %s53, %s67
      %p69 = scmp.eq.s32.totalorder %s22, 0
      %p70 = por %p68, %p69
      %s72 = sadd.s32 %s71, 1
      %p75 = scmp.eq.s32.totalorder %s16, 3
      %p76 = scmp.ne.s32.totalorder %s71, %s73
      %p77 = scmp.eq.s32.totalorder %s16, 0
      %p78 = por %p76, %p77
      %p79 = scmp.ne.s32.totalorder %s71, %s73
      %p80 = scmp.eq.s32.totalorder %s21, 3
      %p81 = por %p79, %p80
      %p82 = scmp.ne.s32.totalorder %s73, %s74
      %p83 = scmp.eq.s32.totalorder %s21, 0
      %p84 = por %p82, %p83
      %p85 = scmp.ne.s32.totalorder %s73, %s74
      %p86 = scmp.eq.s32.totalorder %s22, 3
      %p87 = por %p85, %p86
      %p89 = scmp.ne.s32.totalorder %s74, %s88
      %p90 = scmp.eq.s32.totalorder %s22, 0
      %p91 = por %p89, %p90
      %s93 = sadd.s32 %s92, 1
      %p96 = scmp.eq.s32.totalorder %s16, 3
      %p97 = scmp.ne.s32.totalorder %s92, %s94
      %p98 = scmp.eq.s32.totalorder %s16, 0
      %p99 = por %p97, %p98
      %p100 = scmp.ne.s32.totalorder %s92, %s94
      %p101 = scmp.eq.s32.totalorder %s21, 3
      %p102 = por %p100, %p101
      %p103 = scmp.ne.s32.totalorder %s94, %s95
      %p104 = scmp.eq.s32.totalorder %s21, 0
      %p105 = por %p103, %p104
      %p106 = scmp.ne.s32.totalorder %s94, %s95
      %p107 = scmp.eq.s32.totalorder %s22, 3
      %p108 = por %p106, %p107
      %p110 = scmp.ne.s32.totalorder %s95, %s109
      %p111 = scmp.eq.s32.totalorder %s22, 0
      %p112 = por %p110, %p111
      %s114 = sadd.s32 %s113, 1
      %p117 = scmp.eq.s32.totalorder %s16, 3
      %p118 = scmp.ne.s32.totalorder %s113, %s115
      %p119 = scmp.eq.s32.totalorder %s16, 0
      %p120 = por %p118, %p119
      %p121 = scmp.ne.s32.totalorder %s113, %s115
      %p122 = scmp.eq.s32.totalorder %s21, 3
      %p123 = por %p121, %p122
      %p124 = scmp.ne.s32.totalorder %s115, %s116
      %p125 = scmp.eq.s32.totalorder %s21, 0
      %p126 = por %p124, %p125
      %p127 = scmp.ne.s32.totalorder %s115, %s116
      %p128 = scmp.eq.s32.totalorder %s22, 3
      %p129 = por %p127, %p128
      %p131 = scmp.ne.s32.totalorder %s116, %s130
      %p132 = scmp.eq.s32.totalorder %s22, 0
      %p133 = por %p131, %p132
      %s135 = sadd.s32 %s134, 1
      %p138 = scmp.eq.s32.totalorder %s16, 3
      %p139 = scmp.ne.s32.totalorder %s134, %s136
      %p140 = scmp.eq.s32.totalorder %s16, 0
      %p141 = por %p139, %p140
      %p142 = scmp.ne.s32.totalorder %s134, %s136
      %p143 = scmp.eq.s32.totalorder %s21, 3
      %p144 = por %p142, %p143
      %p145 = scmp.ne.s32.totalorder %s136, %s137
      %p146 = scmp.eq.s32.totalorder %s21, 0
      %p147 = por %p145, %p146
      %p148 = scmp.ne.s32.totalorder %s136, %s137
      %p149 = scmp.eq.s32.totalorder %s22, 3
      %p150 = por %p148, %p149
      %p152 = scmp.ne.s32.totalorder %s137, %s151
      %p153 = scmp.eq.s32.totalorder %s22, 0
      %p154 = por %p152, %p153
      %s156 = sadd.s32 %s155, 1
      %p159 = scmp.eq.s32.totalorder %s16, 3
      %p160 = scmp.ne.s32.totalorder %s155, %s157
      %p161 = scmp.eq.s32.totalorder %s16, 0
      %p162 = por %p160, %p161
      %p163 = scmp.ne.s32.totalorder %s155, %s157
      %p164 = scmp.eq.s32.totalorder %s21, 3
      %p165 = por %p163, %p164
      %p166 = scmp.ne.s32.totalorder %s157, %s158
      %p167 = scmp.eq.s32.totalorder %s21, 0
      %p168 = por %p166, %p167
      %p169 = scmp.ne.s32.totalorder %s157, %s158
      %p170 = scmp.eq.s32.totalorder %s22, 3
      %p171 = por %p169, %p170
      %p173 = scmp.ne.s32.totalorder %s158, %s172
      %p174 = scmp.eq.s32.totalorder %s22, 0
      %p175 = por %p173, %p174
      %s176 = ssub.s32 %s16, %s23
      %p177 = scmp.eq.s32.totalorder %s176, 0
      %s179 = sadd.s32 %s178, 1
      %s180 = scalar_select %p177, %s178, %s179
      %p183 = pneg %p177
      %p184 = scmp.eq.s32.totalorder %s16, 3
      %p185 = por %p183, %p184
      %p186 = scmp.ne.s32.totalorder %s178, %s181
      %p187 = scmp.eq.s32.totalorder %s16, 0
      %p188 = por %p186, %p187
      %p189 = scmp.ne.s32.totalorder %s178, %s181
      %p190 = scmp.eq.s32.totalorder %s21, 3
      %p191 = por %p189, %p190
      %p192 = scmp.ne.s32.totalorder %s181, %s182
      %p193 = scmp.eq.s32.totalorder %s21, 0
      %p194 = por %p192, %p193
      %p195 = scmp.ne.s32.totalorder %s181, %s182
      %p196 = scmp.eq.s32.totalorder %s22, 3
      %p197 = por %p195, %p196
      %p199 = scmp.ne.s32.totalorder %s182, %s198
      %p200 = scmp.eq.s32.totalorder %s22, 0
      %p201 = por %p199, %p200
      %p202 = scmp.le.s32.totalorder 1, %s16
      %p203 = scmp.lt.s32.totalorder %s16, 5
      %p204 = pnand %p202, %p203
      %p205 = pneg %p204
      // Predicated region
      $region9: #{tpu_custom_call.1} parent=5 // pred_check
        _
      $region10: #{tpu_custom_call.1} parent=5 // pred_check_branch
        %207 = sbr.rel (%p204) target = $region12
      $region11: #{tpu_custom_call.1} parent=5 // pred_region
        %s208 = ssub.s32 %s16, 1
        // Predicated region
        $region13: #{tpu_custom_call.1} parent=11 // pred_check
          %p209 = pneg %p63
        $region14: #{tpu_custom_call.1} parent=11 // pred_check_branch
          %211 = sbr.rel (%p209) target = $region16
        $region15: #{tpu_custom_call.1} parent=11 // pred_region
          _
        $region16: #{tpu_custom_call.1} parent=11 // pred_fallthru
          _
        // Predicated region
        $region17: #{tpu_custom_call.1} parent=11 // pred_check
          %p212 = pneg %p84
        $region18: #{tpu_custom_call.1} parent=11 // pred_check_branch
          %214 = sbr.rel (%p212) target = $region20
        $region19: #{tpu_custom_call.1} parent=11 // pred_region
          _
        $region20: #{tpu_custom_call.1} parent=11 // pred_fallthru
          _
        // Predicated region
        $region21: #{tpu_custom_call.1} parent=11 // pred_check
          %p215 = pneg %p105
        $region22: #{tpu_custom_call.1} parent=11 // pred_check_branch
          %217 = sbr.rel (%p215) target = $region24
        $region23: #{tpu_custom_call.1} parent=11 // pred_region
          _
        $region24: #{tpu_custom_call.1} parent=11 // pred_fallthru
          _
        // Predicated region
        $region25: #{tpu_custom_call.1} parent=11 // pred_check
          %p218 = pneg %p126
        $region26: #{tpu_custom_call.1} parent=11 // pred_check_branch
          %220 = sbr.rel (%p218) target = $region28
        $region27: #{tpu_custom_call.1} parent=11 // pred_region
          _
        $region28: #{tpu_custom_call.1} parent=11 // pred_fallthru
          _
        // Predicated region
        $region29: #{tpu_custom_call.1} parent=11 // pred_check
          %p221 = pneg %p147
        $region30: #{tpu_custom_call.1} parent=11 // pred_check_branch
          %223 = sbr.rel (%p221) target = $region32
        $region31: #{tpu_custom_call.1} parent=11 // pred_region
          _
        $region32: #{tpu_custom_call.1} parent=11 // pred_fallthru
          _
        // Predicated region
        $region33: #{tpu_custom_call.1} parent=11 // pred_check
          %p224 = pneg %p168
        $region34: #{tpu_custom_call.1} parent=11 // pred_check_branch
          %226 = sbr.rel (%p224) target = $region36
        $region35: #{tpu_custom_call.1} parent=11 // pred_region
          _
        $region36: #{tpu_custom_call.1} parent=11 // pred_fallthru
          _
      $region12: #{tpu_custom_call.1} parent=5 // pred_fallthru
        _
      %p227 = scmp.lt.s32.totalorder %s16, 4
      // Predicated region
      $region37: #{tpu_custom_call.1} parent=5 // pred_check
        %p228 = pneg %p227
      $region38: #{tpu_custom_call.1} parent=5 // pred_check_branch
        %230 = sbr.rel (%p228) target = $region40
      $region39: #{tpu_custom_call.1} parent=5 // pred_region
        // Predicated region
        $region41: #{tpu_custom_call.1} parent=39 // pred_check
          %p231 = pneg %p36
        $region42: #{tpu_custom_call.1} parent=39 // pred_check_branch
          %233 = sbr.rel (%p231) target = $region44
        $region43: #{tpu_custom_call.1} parent=39 // pred_region
          %s234 = smul.u32 2, %s16
          %p235 = scmp.lt.s32.totalorder %s234, 7
          %s236 = scalar_select %p235, %s234, 7
          %s237 = smul.addr %s236, 8
          %s238 = scalar_lea.vmem %s0, %s237
          %s239 = smul.u32 2, %s16
        $region44: #{tpu_custom_call.1} parent=39 // pred_fallthru
          _
      $region40: #{tpu_custom_call.1} parent=5 // pred_fallthru
        _
      %p240 = scmp.le.s32.totalorder 1, %s16
      %p241 = scmp.lt.s32.totalorder %s16, 5
      %p242 = pnand %p240, %p241
      %p243 = pneg %p242
      // Predicated region
      $region45: #{tpu_custom_call.1} parent=5 // pred_check
        _
      $region46: #{tpu_custom_call.1} parent=5 // pred_check_branch
        %245 = sbr.rel (%p242) target = $region48
      $region47: #{tpu_custom_call.1} parent=5 // pred_region
        %s246 = ssub.s32 %s16, 1
        %s247 = smul.u32 2, %s21
        %p248 = scmp.lt.s32.totalorder %s247, 7
        %s249 = scalar_select %p248, %s247, 7
        %s250 = smul.addr %s249, 8
        %s251 = scalar_lea.vmem %s0, %s250
        %p252 = pneg %p42
        %p253 = pneg %p39
        %p254 = pneg %p63
        %p255 = pneg %p60
        %p256 = pneg %p84
        %p257 = pneg %p81
        %p258 = pneg %p105
        %p259 = pneg %p102
        %p260 = pneg %p126
        %p261 = pneg %p123
        %p262 = pneg %p147
        %p263 = pneg %p144
        %p264 = pneg %p168
        %p265 = pneg %p165
        %p266 = pneg %p194
        %p267 = pneg %p191
        %s268 = sand.u32 %s181, 1
        %s269 = scalar_lea.sflag [#allocation3], %s268
        %s270 = sand.u32 %s181, 1
        %s271 = smul.addr %s270, 16
        %s272 = scalar_lea.vmem [#allocation2], %s271
        %s273 = smul.u32 2, %s21
        %p274 = scmp.lt.s32.totalorder %s273, 7
        %s275 = scalar_select %p274, %s273, 7
        %s276 = smul.addr %s275, 8
        %s277 = scalar_lea.vmem %s0, %s276
        %s278 = smul.u32 2, %s21
        %s279 = smul.u32 2, %s21
        %v280 = vld [vmem:[%s277] sm:$0xff]
        %v281 = vld [vmem:[%s277 + $0x8] sm:$0xff]
        %v282 = vld [vmem:[%s1] sm:$0xff]
        %v283 = vld [vmem:[%s1 + $0x8] sm:$0xff]
        %v284 = vld [vmem:[%s2] sm:$0x1]
        %v286 = vlaneseq
        %v287 = vshrl.u32 %v286, 7
        %v288 = vsub.s32 0, %v287
        %v289 = vrot.slane %v284, %v288
        %vm291 = vcmask 130048
        %v293 = vsel %vm291, %v280, 0
        %v296 = vsel %vm291, %v281, 0
        %298 = vmatprep.subr.mxu0 0.0
        %299 = vmatpush1.msra.mxu0 0.0
        %300 = vmatprep.subr.mxu0 0.0
        %301 = vmatpush1.msra.mxu0 0.0
        %302 = vmatprep.subr.mxu0 0.0
        %303 = vmatpush1.msra.mxu0 0.0
        %304 = vmatprep.subr.mxu0 0.0
        %305 = vmatpush1.msra.mxu0 0.0
        %306 = vmatprep.subr.mxu0 0.0
        %307 = vmatpush1.msra.mxu0 0.0
        %308 = vmatprep.subr.mxu0 0.0
        %309 = vmatpush1.msra.mxu0 0.0
        %310 = vmatprep.subr.mxu0 0.0
        %311 = vmatpush1.msra.mxu0 0.0
        %312 = vmatprep.subr.mxu0 0.0
        %313 = vmatpush1.msra.mxu0 0.0
        %314 = vmatprep.subr.mxu0 0.0
        %315 = vmatpush1.msra.mxu0 0.0
        %316 = vmatprep.subr.mxu0 0.0
        %317 = vmatpush1.msra.mxu0 0.0
        %318 = vmatprep.subr.mxu0 0.0
        %319 = vmatpush1.msra.mxu0 0.0
        %320 = vmatprep.subr.mxu0 0.0
        %321 = vmatpush1.msra.mxu0 0.0
        %322 = vmatprep.subr.mxu0 0.0
        %323 = vmatpush1.msra.mxu0 0.0
        %324 = vmatprep.subr.mxu0 0.0
        %325 = vmatpush1.msra.mxu0 0.0
        %326 = vmatprep.subr.mxu0 0.0
        %327 = vmatpush1.msra.mxu0 %v283
        %328 = vmatprep.subr.mxu0 0.0
        %329 = vmatpush1.msra.mxu0 %v282
        %330 = vmatprep.subr.mxu0 0.0
        %331 = vmatpush2.msra.mxu0 0.0
        %332 = vmatprep.subr.mxu0 0.0
        %333 = vmatpush2.msra.mxu0 0.0
        %334 = vmatprep.subr.mxu0 0.0
        %335 = vmatpush2.msra.mxu0 0.0
        %336 = vmatprep.subr.mxu0 0.0
        %337 = vmatpush2.msra.mxu0 0.0
        %338 = vmatprep.subr.mxu0 0.0
        %339 = vmatpush2.msra.mxu0 0.0
        %340 = vmatprep.subr.mxu0 0.0
        %341 = vmatpush2.msra.mxu0 0.0
        %342 = vmatprep.subr.mxu0 0.0
        %343 = vmatpush2.msra.mxu0 0.0
        %344 = vmatprep.subr.mxu0 0.0
        %345 = vmatpush2.msra.mxu0 0.0
        %346 = vmatprep.subr.mxu0 0.0
        %347 = vmatpush2.msra.mxu0 0.0
        %348 = vmatprep.subr.mxu0 0.0
        %349 = vmatpush2.msra.mxu0 0.0
        %350 = vmatprep.subr.mxu0 0.0
        %351 = vmatpush2.msra.mxu0 0.0
        %352 = vmatprep.subr.mxu0 0.0
        %353 = vmatpush2.msra.mxu0 0.0
        %354 = vmatprep.subr.mxu0 0.0
        %355 = vmatpush2.msra.mxu0 0.0
        %356 = vmatprep.subr.mxu0 0.0
        %357 = vmatpush2.msra.mxu0 0.0
        %358 = vmatprep.subr.mxu0 0.0
        %359 = vmatpush2.msra.mxu0 0.0
        %360 = vmatprep.subr.mxu0 0.0
        %361 = vmatpush2.msra.mxu0 0.0
        %362 = vmatprep.mubr.f32.mxu0 0.0
        %363 = vmatmul.mubr.f32.gmra.mxu0 %v293
        %v364 = vpop.f32.mrf.mxu0
        %v365 = vadd.f32 %v289, %v364
        %v366 = vpop.f32.mrf.mxu0
        %367 = vmatprep.mubr.f32.mxu0 0.0
        %368 = vmatmul.mubr.f32.gmra.mxu0 %v296
        %v369 = vpop.f32.mrf.mxu0
        %v370 = vadd.f32 %v289, %v369
        %v371 = vpop.f32.mrf.mxu0
        %372 = vdwg.mxu0
        %v373 = vmax.f32 %v365, 0.0
        %v374 = vmax.f32 %v370, 0.0
        %v375 = vld [vmem:[%s3] sm:$0xff]
        %v376 = vld [vmem:[%s3 + $0x8] sm:$0xff]
        %v377 = vld [vmem:[%s3 + $0x10] sm:$0xff]
        %v378 = vld [vmem:[%s3 + $0x18] sm:$0xff]
        %v379 = vld [vmem:[%s3 + $0x20] sm:$0xff]
        %v380 = vld [vmem:[%s3 + $0x28] sm:$0xff]
        %v381 = vld [vmem:[%s3 + $0x30] sm:$0xff]
        %v382 = vld [vmem:[%s3 + $0x38] sm:$0xff]
        %v383 = vld [vmem:[%s4] sm:$0x1]
        %v385 = vlaneseq
        %v386 = vshrl.u32 %v385, 7
        %v387 = vsub.s32 0, %v386
        %v388 = vrot.slane %v383, %v387
        %vm390 = vcmask 523264
        %v392 = vsel %vm390, %v373, 0
        %v395 = vsel %vm390, %v374, 0
        %397 = vmatprep.subr.mxu0 0.0
        %398 = vmatpush1.msra.mxu0 0.0
        %399 = vmatprep.subr.mxu0 0.0
        %400 = vmatpush1.msra.mxu0 0.0
        %401 = vmatprep.subr.mxu0 0.0
        %402 = vmatpush1.msra.mxu0 0.0
        %403 = vmatprep.subr.mxu0 0.0
        %404 = vmatpush1.msra.mxu0 0.0
        %405 = vmatprep.subr.mxu0 0.0
        %406 = vmatpush1.msra.mxu0 0.0
        %407 = vmatprep.subr.mxu0 0.0
        %408 = vmatpush1.msra.mxu0 0.0
        %409 = vmatprep.subr.mxu0 0.0
        %410 = vmatpush1.msra.mxu0 0.0
        %411 = vmatprep.subr.mxu0 0.0
        %412 = vmatpush1.msra.mxu0 0.0
        %413 = vmatprep.subr.mxu0 0.0
        %414 = vmatpush1.msra.mxu0 %v382
        %415 = vmatprep.subr.mxu0 0.0
        %416 = vmatpush1.msra.mxu0 %v381
        %417 = vmatprep.subr.mxu0 0.0
        %418 = vmatpush1.msra.mxu0 %v380
        %419 = vmatprep.subr.mxu0 0.0
        %420 = vmatpush1.msra.mxu0 %v379
        %421 = vmatprep.subr.mxu0 0.0
        %422 = vmatpush1.msra.mxu0 %v378
        %423 = vmatprep.subr.mxu0 0.0
        %424 = vmatpush1.msra.mxu0 %v377
        %425 = vmatprep.subr.mxu0 0.0
        %426 = vmatpush1.msra.mxu0 %v376
        %427 = vmatprep.subr.mxu0 0.0
        %428 = vmatpush1.msra.mxu0 %v375
        %429 = vmatprep.subr.mxu0 0.0
        %430 = vmatpush2.msra.mxu0 0.0
        %431 = vmatprep.subr.mxu0 0.0
        %432 = vmatpush2.msra.mxu0 0.0
        %433 = vmatprep.subr.mxu0 0.0
        %434 = vmatpush2.msra.mxu0 0.0
        %435 = vmatprep.subr.mxu0 0.0
        %436 = vmatpush2.msra.mxu0 0.0
        %437 = vmatprep.subr.mxu0 0.0
        %438 = vmatpush2.msra.mxu0 0.0
        %439 = vmatprep.subr.mxu0 0.0
        %440 = vmatpush2.msra.mxu0 0.0
        %441 = vmatprep.subr.mxu0 0.0
        %442 = vmatpush2.msra.mxu0 0.0
        %443 = vmatprep.subr.mxu0 0.0
        %444 = vmatpush2.msra.mxu0 0.0
        %445 = vmatprep.subr.mxu0 0.0
        %446 = vmatpush2.msra.mxu0 0.0
        %447 = vmatprep.subr.mxu0 0.0
        %448 = vmatpush2.msra.mxu0 0.0
        %449 = vmatprep.subr.mxu0 0.0
        %450 = vmatpush2.msra.mxu0 0.0
        %451 = vmatprep.subr.mxu0 0.0
        %452 = vmatpush2.msra.mxu0 0.0
        %453 = vmatprep.subr.mxu0 0.0
        %454 = vmatpush2.msra.mxu0 0.0
        %455 = vmatprep.subr.mxu0 0.0
        %456 = vmatpush2.msra.mxu0 0.0
        %457 = vmatprep.subr.mxu0 0.0
        %458 = vmatpush2.msra.mxu0 0.0
        %459 = vmatprep.subr.mxu0 0.0
        %460 = vmatpush2.msra.mxu0 0.0
        %461 = vmatprep.mubr.f32.mxu0 0.0
        %462 = vmatmul.mubr.f32.gmra.mxu0 %v392
        %v463 = vpop.f32.mrf.mxu0
        %v464 = vadd.f32 %v388, %v463
        %v465 = vpop.f32.mrf.mxu0
        %466 = vmatprep.mubr.f32.mxu0 0.0
        %467 = vmatmul.mubr.f32.gmra.mxu0 %v395
        %v468 = vpop.f32.mrf.mxu0
        %v469 = vadd.f32 %v388, %v468
        %v470 = vpop.f32.mrf.mxu0
        %471 = vdwg.mxu0
        %v472 = vmax.f32 %v464, 0.0
        %v473 = vmax.f32 %v469, 0.0
        %v474 = vld [vmem:[%s5] sm:$0xff]
        %v475 = vld [vmem:[%s5 + $0x8] sm:$0xff]
        %v476 = vld [vmem:[%s5 + $0x10] sm:$0xff]
        %v477 = vld [vmem:[%s5 + $0x18] sm:$0xff]
        %v478 = vld [vmem:[%s5 + $0x20] sm:$0xff]
        %v479 = vld [vmem:[%s5 + $0x28] sm:$0xff]
        %v480 = vld [vmem:[%s5 + $0x30] sm:$0xff]
        %v481 = vld [vmem:[%s5 + $0x38] sm:$0xff]
        %v482 = vld [vmem:[%s6] sm:$0x1]
        %v484 = vlaneseq
        %v485 = vshrl.u32 %v484, 7
        %v486 = vsub.s32 0, %v485
        %v487 = vrot.slane %v482, %v486
        %v490 = vsel %vm390, %v472, 0
        %v493 = vsel %vm390, %v473, 0
        %495 = vmatprep.subr.mxu0 0.0
        %496 = vmatpush1.msra.mxu0 0.0
        %497 = vmatprep.subr.mxu0 0.0
        %498 = vmatpush1.msra.mxu0 0.0
        %499 = vmatprep.subr.mxu0 0.0
        %500 = vmatpush1.msra.mxu0 0.0
        %501 = vmatprep.subr.mxu0 0.0
        %502 = vmatpush1.msra.mxu0 0.0
        %503 = vmatprep.subr.mxu0 0.0
        %504 = vmatpush1.msra.mxu0 0.0
        %505 = vmatprep.subr.mxu0 0.0
        %506 = vmatpush1.msra.mxu0 0.0
        %507 = vmatprep.subr.mxu0 0.0
        %508 = vmatpush1.msra.mxu0 0.0
        %509 = vmatprep.subr.mxu0 0.0
        %510 = vmatpush1.msra.mxu0 0.0
        %511 = vmatprep.subr.mxu0 0.0
        %512 = vmatpush1.msra.mxu0 %v481
        %513 = vmatprep.subr.mxu0 0.0
        %514 = vmatpush1.msra.mxu0 %v480
        %515 = vmatprep.subr.mxu0 0.0
        %516 = vmatpush1.msra.mxu0 %v479
        %517 = vmatprep.subr.mxu0 0.0
        %518 = vmatpush1.msra.mxu0 %v478
        %519 = vmatprep.subr.mxu0 0.0
        %520 = vmatpush1.msra.mxu0 %v477
        %521 = vmatprep.subr.mxu0 0.0
        %522 = vmatpush1.msra.mxu0 %v476
        %523 = vmatprep.subr.mxu0 0.0
        %524 = vmatpush1.msra.mxu0 %v475
        %525 = vmatprep.subr.mxu0 0.0
        %526 = vmatpush1.msra.mxu0 %v474
        %527 = vmatprep.subr.mxu0 0.0
        %528 = vmatpush2.msra.mxu0 0.0
        %529 = vmatprep.subr.mxu0 0.0
        %530 = vmatpush2.msra.mxu0 0.0
        %531 = vmatprep.subr.mxu0 0.0
        %532 = vmatpush2.msra.mxu0 0.0
        %533 = vmatprep.subr.mxu0 0.0
        %534 = vmatpush2.msra.mxu0 0.0
        %535 = vmatprep.subr.mxu0 0.0
        %536 = vmatpush2.msra.mxu0 0.0
        %537 = vmatprep.subr.mxu0 0.0
        %538 = vmatpush2.msra.mxu0 0.0
        %539 = vmatprep.subr.mxu0 0.0
        %540 = vmatpush2.msra.mxu0 0.0
        %541 = vmatprep.subr.mxu0 0.0
        %542 = vmatpush2.msra.mxu0 0.0
        %543 = vmatprep.subr.mxu0 0.0
        %544 = vmatpush2.msra.mxu0 0.0
        %545 = vmatprep.subr.mxu0 0.0
        %546 = vmatpush2.msra.mxu0 0.0
        %547 = vmatprep.subr.mxu0 0.0
        %548 = vmatpush2.msra.mxu0 0.0
        %549 = vmatprep.subr.mxu0 0.0
        %550 = vmatpush2.msra.mxu0 0.0
        %551 = vmatprep.subr.mxu0 0.0
        %552 = vmatpush2.msra.mxu0 0.0
        %553 = vmatprep.subr.mxu0 0.0
        %554 = vmatpush2.msra.mxu0 0.0
        %555 = vmatprep.subr.mxu0 0.0
        %556 = vmatpush2.msra.mxu0 0.0
        %557 = vmatprep.subr.mxu0 0.0
        %558 = vmatpush2.msra.mxu0 0.0
        %559 = vmatprep.mubr.f32.mxu0 0.0
        %560 = vmatmul.mubr.f32.gmra.mxu0 %v490
        %v561 = vpop.f32.mrf.mxu0
        %v562 = vadd.f32 %v487, %v561
        %v563 = vpop.f32.mrf.mxu0
        %564 = vmatprep.mubr.f32.mxu0 0.0
        %565 = vmatmul.mubr.f32.gmra.mxu0 %v493
        %v566 = vpop.f32.mrf.mxu0
        %v567 = vadd.f32 %v487, %v566
        %v568 = vpop.f32.mrf.mxu0
        %569 = vdwg.mxu0
        %v570 = vsel %vm291, %v562, 0.0
        %v571 = vsel %vm291, %v567, 0.0
        %572 = vst [vmem:[%s272] sm:$0xff] %v570
        %573 = vst [vmem:[%s272 + $0x8] sm:$0xff] %v571
        %s574 = sand.u32 %s181, 1
        %s575 = scalar_lea.sflag [#allocation3], %s574
        %s576 = sand.u32 %s181, 1
        %s577 = smul.addr %s576, 16
        %s578 = scalar_lea.vmem [#allocation2], %s577
        // Predicated region
        $region49: #{tpu_custom_call.1} parent=47 // pred_check
          %p579 = pneg %p191
        $region50: #{tpu_custom_call.1} parent=47 // pred_check_branch
          %581 = sbr.rel (%p579) target = $region52
        $region51: #{tpu_custom_call.1} parent=47 // pred_region
          %s582 = smul.u32 2, %s21
          %s584 = ssub.s32 256, 256
          %585 = vsyncadd %s575, %s584
          %s586 = smul.addr %s582, 128
          %s587 = scalar_lea.hbm %s7, %s586
          %s588 = sshll.u32 %s578, 4
          %s589 = int_to_ptr.vmem [resolvable:$true] %s588
          %594 = dma.vmem_to_hbm [thread:$0]  %s589, 256, %s587, %s575, 128, 128, 8
        $region52: #{tpu_custom_call.1} parent=47 // pred_fallthru
          _
      $region48: #{tpu_custom_call.1} parent=5 // pred_fallthru
        _
      %p595 = scmp.le.s32.totalorder 2, %s16
      // Predicated region
      $region53: #{tpu_custom_call.1} parent=5 // pred_check
        %p596 = pneg %p595
      $region54: #{tpu_custom_call.1} parent=5 // pred_check_branch
        %598 = sbr.rel (%p596) target = $region56
      $region55: #{tpu_custom_call.1} parent=5 // pred_region
        %s599 = ssub.s32 %s16, 2
        // Predicated region
        $region57: #{tpu_custom_call.1} parent=55 // pred_check
          %p600 = pneg %p197
        $region58: #{tpu_custom_call.1} parent=55 // pred_check_branch
          %602 = sbr.rel (%p600) target = $region60
        $region59: #{tpu_custom_call.1} parent=55 // pred_region
          %s603 = sand.u32 %s182, 1
          %s604 = scalar_lea.sflag [#allocation3], %s603
          %s605 = sand.u32 %s182, 1
          %s606 = smul.addr %s605, 16
          %s607 = scalar_lea.vmem [#allocation2], %s606
          %608 = dma.done %s604, 256
        $region60: #{tpu_custom_call.1} parent=55 // pred_fallthru
          _
      $region56: #{tpu_custom_call.1} parent=5 // pred_fallthru
        _
    $region6: #{tpu_custom_call.1} parent=1 // loop_footer
      %s20 = sadd.s32 1, %s16
    $region7: #{tpu_custom_call.1} parent=1 // loop_footer_branch
      %15 = sbr.rel target = $region3
    $region8: #{tpu_custom_call.1} parent=1 // loop_exit
      _
    %609 = vsyncpa [#allocation3], 1
    %s610 = scalar_lea.sflag [#allocation3], 1
    %611 = vsyncpa %s610, 1

</llo_original>
